<compile_context>
chip_gen: v7x
topology: tpu7x:2x2x1
jax: 0.10.0
libtpu: 0.0.40
codegen_flags: <defaults>
</compile_context>

<pallas_src>
import jax
import jax.numpy as jnp
import numpy as np
from jax.experimental import pallas as pl
from jax.experimental.pallas import tpu as pltpu


def _round_up(x, m):
    return ((x + m - 1) // m) * m


def _choose_tn(n, target=2048):
    """Pick a point-dim tile: full N when it fits, else a lane-aligned tile
    close to `target` that keeps padding small."""
    if n <= target:
        return n
    n_tiles = (n + target - 1) // target
    tn = _round_up(-(-n // n_tiles), 128)
    return tn


def _make_fused_kernel(branch_c0, branch_rest_cout):
    """Fused kernel: all SharedMLP branches + running max over the N tiles.

    refs = (x_ref, w0_cat, b0_cat, [w, b]*rest_layers..., out_ref, acc_ref)
      x_ref   : (1, C_in_pad, TN)    bf16  one batch element, one N tile
      w0_cat  : (C0_total, C_in_pad) bf16  layer-0 weights of all branches
      b0_cat  : (C0_total, 1)        f32   layer-0 biases
      w, b    : per-branch remaining layers (bf16 / f32)
      out_ref : (1, C_out_total, 1)  f32   max over N of concatenated outputs
      acc_ref : (C_out_total, 1)     f32   running-max scratch (lives across N tiles)
    """
    nb = len(branch_c0)

    def kernel(x_ref, w0_ref, b0_ref, *refs):
        out_ref = refs[-2]
        acc_ref = refs[-1]
        wb_refs = refs[:-2]

        nk = pl.program_id(1)

        @pl.when(nk == 0)
        def _init():
            acc_ref[...] = jnp.full_like(acc_ref, -jnp.inf)

        x = x_ref[0]                                   # (C_in_pad, TN) bf16
        w0 = w0_ref[...]                               # (C0_total, C_in_pad) bf16
        b0 = b0_ref[...]                               # (C0_total, 1) f32
        # single fused layer-0 matmul for every branch
        h0 = jnp.maximum(
            jnp.dot(w0, x, preferred_element_type=jnp.float32) + b0, 0.0)

        ref_i = 0
        c0_off = 0
        branch_max = []
        for bi in range(nb):
            c0 = branch_c0[bi]
            h = h0[c0_off:c0_off + c0]                 # (c0, TN) f32
            c0_off += c0
            for _c_out in branch_rest_cout[bi]:
                w = wb_refs[ref_i][...]                # (c_out, c_prev) bf16
                b = wb_refs[ref_i + 1][...]            # (c_out, 1) f32
                ref_i += 2
                h = jnp.maximum(
                    jnp.dot(w, h.astype(jnp.bfloat16),
                            preferred_element_type=jnp.float32) + b, 0.0)
            branch_max.append(jnp.max(h, axis=1, keepdims=True))  # (c_last, 1)

        bmax = branch_max[0] if nb == 1 else jnp.concatenate(branch_max, axis=0)
        acc_ref[...] = jnp.maximum(acc_ref[...], bmax)

        @pl.when(nk == pl.num_programs(1) - 1)
        def _finish():
            out_ref[0] = acc_ref[...]

    return kernel


class PointNetAModulePallas:
    """JAX/Pallas port of PointNetAModule forward (eval mode)."""

    def __init__(self, in_channels, out_channels, include_coordinates=True,
                 c_dim=-1, *, key):
        if not isinstance(out_channels, (list, tuple)):
            out_channels = [[out_channels]]
        elif not isinstance(out_channels[0], (list, tuple)):
            out_channels = [out_channels]

        self.include_coordinates = include_coordinates
        self.c_dim = c_dim
        self.out_channels = sum(oc[-1] for oc in out_channels)

        c_in_raw = in_channels + (3 if include_coordinates else 0)
        self.c_in_raw = c_in_raw
        self.c_in_pad = _round_up(c_in_raw, 8)

        eps = 1e-5
        # NOTE: fold assumes running_mean=0, running_var=1 (fresh module, eval
        # mode).  A trained checkpoint must plug its real running stats here.
        branch_params = []  # per-branch [(w (co,ci) f32, b (co,1) f32), ...]
        for branch_oc in out_channels:
            c_in = c_in_raw
            layers = []
            for oc in branch_oc:
                key, k_w, k_b, k_g, k_be = jax.random.split(key, 5)
                conv_w = jax.random.normal(k_w, (oc, c_in), jnp.float32) * 0.1
                conv_b = jax.random.normal(k_b, (oc,), jnp.float32) * 0.1
                gamma = 1.0 + 0.1 * jax.random.normal(k_g, (oc,), jnp.float32)
                beta = 0.1 * jax.random.normal(k_be, (oc,), jnp.float32)
                scale = gamma / jnp.sqrt(1.0 + eps)
                w_eff = conv_w * scale[:, None]                # (oc, c_in)
                b_eff = (conv_b * scale + beta)[:, None]       # (oc, 1)
                layers.append((w_eff, b_eff))
                c_in = oc
            branch_params.append(layers)
        self._branch_params_ref = branch_params  # f32, for the pure-JAX reference

        # ---- kernel-side fused / padded / bf16 parameters ----
        pad = self.c_in_pad - c_in_raw
        self.branch_c0 = tuple(bp[0][0].shape[0] for bp in branch_params)
        w0_list, b0_list = [], []
        for layers in branch_params:
            w0, b0 = layers[0]
            if pad:
                w0 = jnp.concatenate(
                    [w0, jnp.zeros((w0.shape[0], pad), jnp.float32)], axis=1)
            w0_list.append(w0)
            b0_list.append(b0)
        # layer-0 of all branches fused along C_out (same input for every branch)
        self.w0_cat = jnp.concatenate(w0_list, axis=0).astype(jnp.bfloat16)
        self.b0_cat = jnp.concatenate(b0_list, axis=0)         # f32 (C0_total, 1)

        self.rest_params = []       # per-branch [(w bf16, b f32), ...] layers 1..L
        branch_rest_cout = []
        for layers in branch_params:
            rest = [(w.astype(jnp.bfloat16), b) for (w, b) in layers[1:]]
            self.rest_params.append(rest)
            branch_rest_cout.append(tuple(w.shape[0] for (w, _) in layers[1:]))
        self.branch_rest_cout = tuple(branch_rest_cout)

    def _pallas_forward(self, x, tn):
        """x: (B, C_in_pad, N_pad) bf16, N_pad % tn == 0. Returns (B, C_out, 1) f32."""
        B, c_in_pad, n_pad = x.shape
        n_tiles = n_pad // tn
        c_out_total = self.out_channels

        in_specs = [
            pl.BlockSpec((1, c_in_pad, tn), lambda b, n: (b, 0, n)),
            pl.BlockSpec(self.w0_cat.shape, lambda b, n: (0, 0)),
            pl.BlockSpec(self.b0_cat.shape, lambda b, n: (0, 0)),
        ]
        args = [x, self.w0_cat, self.b0_cat]
        for rest in self.rest_params:
            for w, bvec in rest:
                in_specs.append(pl.BlockSpec(w.shape, lambda b, n: (0, 0)))
                in_specs.append(pl.BlockSpec(bvec.shape, lambda b, n: (0, 0)))
                args.append(w)
                args.append(bvec)

        kernel = _make_fused_kernel(self.branch_c0, self.branch_rest_cout)
        return pl.pallas_call(
            kernel,
            out_shape=jax.ShapeDtypeStruct((B, c_out_total, 1), jnp.float32),
            grid=(B, n_tiles),
            in_specs=in_specs,
            out_specs=pl.BlockSpec((1, c_out_total, 1), lambda b, n: (b, 0, 0)),
            scratch_shapes=[pltpu.VMEM((c_out_total, 1), jnp.float32)],
            compiler_params=pltpu.CompilerParams(
                dimension_semantics=("parallel", "arbitrary")),
        )(*args)

    def __call__(self, inputs):
        features, coords, condition = inputs   # (B,D,N), (B,3,N), (B,Dc)
        del condition  # TODO(synk): c_dim > 0 conditioning path not implemented.
        if self.include_coordinates:
            x = jnp.concatenate([features, coords], axis=1)
        else:
            x = features
        B, c_in, N = x.shape

        # channel padding (folded into zero weight columns)
        pad_c = self.c_in_pad - c_in
        if pad_c:
            x = jnp.concatenate([x, jnp.zeros((B, pad_c, N), x.dtype)], axis=1)

        # point padding to a full tile grid; replicate column 0 so max is unchanged
        tn = _choose_tn(N)
        n_pad = _round_up(N, tn)
        if n_pad != N:
            fill = jnp.broadcast_to(x[:, :, :1], (B, self.c_in_pad, n_pad - N))
            x = jnp.concatenate([x, fill], axis=2)

        x = x.astype(jnp.bfloat16)             # native (B, C, N) layout, no transpose
        coords_out = jnp.zeros((B, 3, 1), jnp.float32)
        feat = self._pallas_forward(x, tn)     # (B, C_out_total, 1)
        return feat, coords_out

    # pure-JAX f32 reference (torch eval-mode semantics with folded BN)
    def reference(self, inputs):
        features, coords, _ = inputs
        if self.include_coordinates:
            x = jnp.concatenate([features, coords], axis=1)
        else:
            x = features
        B = coords.shape[0]
        coords_out = jnp.zeros((B, 3, 1), jnp.float32)
        x = x.astype(jnp.float32)              # (B, C, N)
        outs = []
        for layers in self._branch_params_ref:
            h = x
            for w, b in layers:
                h = jnp.maximum(jnp.einsum("oc,bcn->bon", w, h) + b[None], 0.0)
            outs.append(jnp.max(h, axis=-1, keepdims=True))
        feat = jnp.concatenate(outs, axis=1) if len(outs) > 1 else outs[0]
        return feat, coords_out


if __name__ == "__main__":
    key = jax.random.PRNGKey(0)
    k_feat, k_coord, k_cond, k_param = jax.random.split(key, 4)

    B, D, N, C_DIM = 2, 4, 16, 8
    features = jax.random.normal(k_feat, (B, D, N), jnp.float32)
    coords = jax.random.normal(k_coord, (B, 3, N), jnp.float32)
    condition = jax.random.normal(k_cond, (B, C_DIM), jnp.float32)

    # two MLP branches: [16] and [16, 32] -> total out channels = 48
    module = PointNetAModulePallas(
        in_channels=D,
        out_channels=[[16], [16, 32]],
        include_coordinates=True,
        c_dim=-1,
        key=k_param,
    )

    out_feat, out_coords = module((features, coords, condition))
    out_feat = jax.block_until_ready(out_feat)
    out_coords = jax.block_until_ready(out_coords)

    ref_feat, ref_coords = module.reference((features, coords, condition))

    assert out_feat.shape == (B, module.out_channels, 1), out_feat.shape
    assert out_coords.shape == (B, 3, 1), out_coords.shape
    # kernel runs bf16 matmul inputs with f32 accumulation; reference is pure f32
    np.testing.assert_allclose(np.asarray(out_feat), np.asarray(ref_feat),
                               rtol=2e-2, atol=2e-2)
    np.testing.assert_allclose(np.asarray(out_coords), np.asarray(ref_coords))

    print("KERNEL_OK")
</pallas_src>

<mosaic_0001>
module attributes {stable_mosaic.version = 11 : i64} {
  func.func @kernel(%arg0: i32, %arg1: i32, %arg2: memref<1x8x16xbf16, #tpu.memory_space<vmem>>, %arg3: memref<32x8xbf16, #tpu.memory_space<vmem>>, %arg4: memref<32x1xf32, #tpu.memory_space<vmem>>, %arg5: memref<32x16xbf16, #tpu.memory_space<vmem>>, %arg6: memref<32x1xf32, #tpu.memory_space<vmem>>, %arg7: memref<1x48x1xf32, #tpu.memory_space<vmem>>, %arg8: memref<48x1xf32, #tpu.memory_space<vmem>>) attributes {dimension_semantics = [#tpu.dimension_semantics<parallel>, #tpu.dimension_semantics<arbitrary>], iteration_bounds = array<i64: 2, 1>, scalar_prefetch = 0 : i64, scratch_operands = 1 : i64, tpu.core_type = #tpu.core_type<tc>, window_params = [{transform_indices = @transform_0, window_bounds = array<i64: 1, 8, 16>}, {pipeline_mode = #tpu.pipeline_mode<synchronous>, transform_indices = @transform_1, window_bounds = array<i64: 32, 8>}, {pipeline_mode = #tpu.pipeline_mode<synchronous>, transform_indices = @transform_2, window_bounds = array<i64: 32, 1>}, {pipeline_mode = #tpu.pipeline_mode<synchronous>, transform_indices = @transform_3, window_bounds = array<i64: 32, 16>}, {pipeline_mode = #tpu.pipeline_mode<synchronous>, transform_indices = @transform_4, window_bounds = array<i64: 32, 1>}, {transform_indices = @transform_5, window_bounds = array<i64: 1, 48, 1>}]} {
    %c0_i32 = arith.constant 0 : i32
    %0 = arith.cmpi eq, %arg1, %c0_i32 : i32
    %1 = arith.extui %0 : i1 to i32
    %c0_i32_0 = arith.constant 0 : i32
    %2 = arith.cmpi ne, %1, %c0_i32_0 : i32
    scf.if %2 {
      %cst_22 = arith.constant 0xFF800000 : f32
      %33 = vector.broadcast %cst_22 : f32 to vector<48x1xf32>
      %c0_23 = arith.constant 0 : index
      %c0_24 = arith.constant 0 : index
      %34 = vector.load %arg8[%c0_23, %c0_24] : memref<48x1xf32, #tpu.memory_space<vmem>>, vector<48x1xf32>
      tpu.vector_store %arg8[%c0_23, %c0_24], %33 {strides = array<i32>} : memref<48x1xf32, #tpu.memory_space<vmem>>, vector<48x1xf32>,
    } else {
    }
    %c0 = arith.constant 0 : index
    %c0_1 = arith.constant 0 : index
    %c0_2 = arith.constant 0 : index
    %3 = vector.load %arg2[%c0, %c0_1, %c0_2] : memref<1x8x16xbf16, #tpu.memory_space<vmem>>, vector<1x8x16xbf16>
    %4 = vector.shape_cast %3 : vector<1x8x16xbf16> to vector<8x16xbf16>
    %c0_3 = arith.constant 0 : index
    %c0_4 = arith.constant 0 : index
    %5 = vector.load %arg3[%c0_3, %c0_4] : memref<32x8xbf16, #tpu.memory_space<vmem>>, vector<32x8xbf16>
    %c0_5 = arith.constant 0 : index
    %c0_6 = arith.constant 0 : index
    %6 = vector.load %arg4[%c0_5, %c0_6] : memref<32x1xf32, #tpu.memory_space<vmem>>, vector<32x1xf32>
    %cst = arith.constant dense<0.000000e+00> : vector<32x16xf32>
    %7 = tpu.matmul %5, %4, %cst {dimension_numbers = #tpu.dot_dimension_numbers<[1], [0], [0], [1], [0, 0, 1, 1], [], []>} : vector<32x8xbf16>, vector<8x16xbf16>, vector<32x16xf32> -> vector<32x16xf32>
    %8 = vector.broadcast %6 : vector<32x1xf32> to vector<32x16xf32>
    %9 = arith.addf %7, %8 : vector<32x16xf32>
    %cst_7 = arith.constant 0.000000e+00 : f32
    %10 = vector.broadcast %cst_7 : f32 to vector<32x16xf32>
    %11 = arith.maximumf %9, %10 : vector<32x16xf32>
    %12 = vector.extract_strided_slice %11 {offsets = [0, 0], sizes = [16, 16], strides = [1, 1]} : vector<32x16xf32> to vector<16x16xf32>
    %cst_8 = arith.constant dense<0xFF800000> : vector<16xf32>
    %13 = vector.multi_reduction <maximumf>, %12, %cst_8 [1] : vector<16x16xf32> to vector<16xf32>
    %14 = vector.shape_cast %13 : vector<16xf32> to vector<16x1xf32>
    %15 = vector.extract_strided_slice %11 {offsets = [16, 0], sizes = [16, 16], strides = [1, 1]} : vector<32x16xf32> to vector<16x16xf32>
    %c0_9 = arith.constant 0 : index
    %c0_10 = arith.constant 0 : index
    %16 = vector.load %arg5[%c0_9, %c0_10] : memref<32x16xbf16, #tpu.memory_space<vmem>>, vector<32x16xbf16>
    %c0_11 = arith.constant 0 : index
    %c0_12 = arith.constant 0 : index
    %17 = vector.load %arg6[%c0_11, %c0_12] : memref<32x1xf32, #tpu.memory_space<vmem>>, vector<32x1xf32>
    %18 = arith.truncf %15 : vector<16x16xf32> to vector<16x16xbf16>
    %cst_13 = arith.constant dense<0.000000e+00> : vector<32x16xf32>
    %19 = tpu.matmul %16, %18, %cst_13 {dimension_numbers = #tpu.dot_dimension_numbers<[1], [0], [0], [1], [0, 0, 1, 1], [], []>} : vector<32x16xbf16>, vector<16x16xbf16>, vector<32x16xf32> -> vector<32x16xf32>
    %20 = vector.broadcast %17 : vector<32x1xf32> to vector<32x16xf32>
    %21 = arith.addf %19, %20 : vector<32x16xf32>
    %cst_14 = arith.constant 0.000000e+00 : f32
    %22 = vector.broadcast %cst_14 : f32 to vector<32x16xf32>
    %23 = arith.maximumf %21, %22 : vector<32x16xf32>
    %cst_15 = arith.constant dense<0xFF800000> : vector<32xf32>
    %24 = vector.multi_reduction <maximumf>, %23, %cst_15 [1] : vector<32x16xf32> to vector<32xf32>
    %25 = vector.shape_cast %24 : vector<32xf32> to vector<32x1xf32>
    %26 = tpu.concatenate %14, %25 in 0 : vector<16x1xf32>, vector<32x1xf32> -> vector<48x1xf32>
    %c0_16 = arith.constant 0 : index
    %c0_17 = arith.constant 0 : index
    %27 = vector.load %arg8[%c0_16, %c0_17] : memref<48x1xf32, #tpu.memory_space<vmem>>, vector<48x1xf32>
    %28 = arith.maximumf %27, %26 : vector<48x1xf32>
    %c0_18 = arith.constant 0 : index
    %c0_19 = arith.constant 0 : index
    %29 = vector.load %arg8[%c0_18, %c0_19] : memref<48x1xf32, #tpu.memory_space<vmem>>, vector<48x1xf32>
    tpu.vector_store %arg8[%c0_18, %c0_19], %28 {strides = array<i32>} : memref<48x1xf32, #tpu.memory_space<vmem>>, vector<48x1xf32>,
    %c0_i32_20 = arith.constant 0 : i32
    %30 = arith.cmpi eq, %arg1, %c0_i32_20 : i32
    %31 = arith.extui %30 : i1 to i32
    %c0_i32_21 = arith.constant 0 : i32
    %32 = arith.cmpi ne, %31, %c0_i32_21 : i32
    scf.if %32 {
      %c0_22 = arith.constant 0 : index
      %c0_23 = arith.constant 0 : index
      %33 = vector.load %arg8[%c0_22, %c0_23] : memref<48x1xf32, #tpu.memory_space<vmem>>, vector<48x1xf32>
      %c0_24 = arith.constant 0 : index
      %c0_25 = arith.constant 0 : index
      %c0_26 = arith.constant 0 : index
      %34 = vector.load %arg7[%c0_24, %c0_25, %c0_26] : memref<1x48x1xf32, #tpu.memory_space<vmem>>, vector<1x48x1xf32>
      %35 = vector.shape_cast %34 : vector<1x48x1xf32> to vector<48x1xf32>
      %36 = vector.shape_cast %33 : vector<48x1xf32> to vector<1x48x1xf32>
      tpu.vector_store %arg7[%c0_24, %c0_25, %c0_26], %36 {strides = array<i32>} : memref<1x48x1xf32, #tpu.memory_space<vmem>>, vector<1x48x1xf32>,
    } else {
    }
    return
  }
  func.func @transform_0(%arg0: i32, %arg1: i32) -> (i32, i32, i32) {
    %c0_i32 = arith.constant 0 : i32
    %c0_i32_0 = arith.constant 0 : i32
    return %arg0, %c0_i32, %arg1 : i32, i32, i32
  }
  func.func @transform_1(%arg0: i32, %arg1: i32) -> (i32, i32) {
    %c0_i32 = arith.constant 0 : i32
    %c0_i32_0 = arith.constant 0 : i32
    %c0_i32_1 = arith.constant 0 : i32
    return %c0_i32, %c0_i32_0 : i32, i32
  }
  func.func @transform_2(%arg0: i32, %arg1: i32) -> (i32, i32) {
    %c0_i32 = arith.constant 0 : i32
    %c0_i32_0 = arith.constant 0 : i32
    %c0_i32_1 = arith.constant 0 : i32
    return %c0_i32, %c0_i32_0 : i32, i32
  }
  func.func @transform_3(%arg0: i32, %arg1: i32) -> (i32, i32) {
    %c0_i32 = arith.constant 0 : i32
    %c0_i32_0 = arith.constant 0 : i32
    %c0_i32_1 = arith.constant 0 : i32
    return %c0_i32, %c0_i32_0 : i32, i32
  }
  func.func @transform_4(%arg0: i32, %arg1: i32) -> (i32, i32) {
    %c0_i32 = arith.constant 0 : i32
    %c0_i32_0 = arith.constant 0 : i32
    %c0_i32_1 = arith.constant 0 : i32
    return %c0_i32, %c0_i32_0 : i32, i32
  }
  func.func @transform_5(%arg0: i32, %arg1: i32) -> (i32, i32, i32) {
    %c0_i32 = arith.constant 0 : i32
    %c0_i32_0 = arith.constant 0 : i32
    %c0_i32_1 = arith.constant 0 : i32
    return %arg0, %c0_i32, %c0_i32_0 : i32, i32, i32
  }
}

</mosaic_0001>

<llo_original>
// kernel: tpu_custom_call.1
$region0: #{tpu_custom_call.1}
  #allocation0 [shape = 'u32[]', space=smem, size = 0x4, offset = 0x4, fixed_abs, tag = 'smem constant byte address 0x4 - core index']
  #allocation1 [shape = 'u32[144,128]{1,0:T(1,128)}', space=vmem, size = 0x12000, scoped, tag = 'internal scratch']
  #allocation2 [shape = 'f32[48,1]{1,0:T(8,128)}', space=vmem, size = 0x6000, scoped, tag = 'scratch operand']
  %s0 = inlined_call_operand.vmem [shape: bf16[2,8,16], index: 0, kind: input, shape index: {}]
  %s1 = inlined_call_operand.vmem [shape: bf16[32,8], index: 1, kind: input, shape index: {}]
  %s2 = inlined_call_operand.vmem [shape: f32[32,1], index: 2, kind: input, shape index: {}]
  %s3 = inlined_call_operand.vmem [shape: bf16[32,16], index: 3, kind: input, shape index: {}]
  %s4 = inlined_call_operand.vmem [shape: f32[32,1], index: 4, kind: input, shape index: {}]
  %s5 = inlined_call_operand.vmem [shape: f32[2,48,1], index: 5, kind: output, shape index: {}]
  %s6 = sld [smem:[#allocation0]]
  $region61: #{tpu_custom_call.1} parent=0
    _
  %s8 = ssub.s32 1, %s6
  %s9 = scalar_select 0, %s8, %s6
  loop: start=0, step=1, limit=4
  $region2: #{tpu_custom_call.1} parent=0 // loop_pre_header
    _
  $region3: #{tpu_custom_call.1} parent=0 // loop_header
    %s11 = sphi 0, %s15
    %p12 = scmp.ge.s32.totalorder %s11, 4
    %s18 = sphi 0, %s30
    %s19 = sphi 0, %s26
    %s20 = sphi 0, %s18
    %s21 = sphi 0, %s19
    %s22 = sphi 0, %s20
    %s23 = sphi 0, %s21
    %s35 = sphi 0, %s37
    %s38 = sphi 0, %s35
    %s39 = sphi 0, %s38
    %s55 = sphi 0, %s39
    %s59 = sphi 0, %s59
    %s61 = sphi 0, %s59
    %s62 = sphi 0, %s61
    %s76 = sphi 0, %s62
    %s80 = sphi 0, %s80
    %s82 = sphi 0, %s80
    %s83 = sphi 0, %s82
    %s97 = sphi 0, %s83
    %s101 = sphi 0, %s101
    %s103 = sphi 0, %s101
    %s104 = sphi 0, %s103
    %s118 = sphi 0, %s104
    %s122 = sphi 0, %s122
    %s124 = sphi 0, %s122
    %s125 = sphi 0, %s124
    %s139 = sphi 0, %s125
    %s145 = sphi 0, %s147
    %s148 = sphi 0, %s145
    %s149 = sphi 0, %s148
    %s165 = sphi 0, %s149
  $region4: #{tpu_custom_call.1} parent=0 // loop_header_branch
    %14 = sbr.rel (%p12) target = $region8
  $region5: #{tpu_custom_call.1} parent=0 // loop_body
    %s16 = ssub.s32 %s11, 1
    %s17 = ssub.s32 %s11, 2
    %s24 = sadd.s32 1, %s19
    %p25 = scmp.ge.s32.totalorder %s24, 1
    %s26 = scalar_select %p25, 0, %s24
    %s27 = sadd.s32 1, %s18
    %s28 = scalar_select %p25, %s27, %s18
    %p29 = scmp.ge.s32.totalorder %s28, 2
    %s30 = scalar_select %p29, 0, %s28
    %s31 = ssub.s32 %s18, %s30
    %s32 = ssub.s32 %s19, %s26
    %s33 = sor.u32 %s31, %s32
    %p34 = scmp.eq.s32.totalorder %s33, 0
    %s36 = sadd.s32 %s35, 1
    %s37 = scalar_select %p34, %s35, %s36
    %p40 = pneg %p34
    %p41 = scmp.eq.s32.totalorder %s11, 1
    %p42 = por %p40, %p41
    %p43 = scmp.ne.s32.totalorder %s35, %s38
    %p44 = scmp.eq.s32.totalorder %s11, 0
    %p45 = por %p43, %p44
    %p46 = scmp.ne.s32.totalorder %s35, %s38
    %p47 = scmp.eq.s32.totalorder %s16, 1
    %p48 = por %p46, %p47
    %p49 = scmp.ne.s32.totalorder %s38, %s39
    %p50 = scmp.eq.s32.totalorder %s16, 0
    %p51 = por %p49, %p50
    %p52 = scmp.ne.s32.totalorder %s38, %s39
    %p53 = scmp.eq.s32.totalorder %s17, 1
    %p54 = por %p52, %p53
    %p56 = scmp.ne.s32.totalorder %s39, %s55
    %p57 = scmp.eq.s32.totalorder %s17, 0
    %p58 = por %p56, %p57
    %s60 = sadd.s32 %s59, 1
    %p63 = scmp.eq.s32.totalorder %s11, 1
    %p64 = scmp.ne.s32.totalorder %s59, %s61
    %p65 = scmp.eq.s32.totalorder %s11, 0
    %p66 = por %p64, %p65
    %p67 = scmp.ne.s32.totalorder %s59, %s61
    %p68 = scmp.eq.s32.totalorder %s16, 1
    %p69 = por %p67, %p68
    %p70 = scmp.ne.s32.totalorder %s61, %s62
    %p71 = scmp.eq.s32.totalorder %s16, 0
    %p72 = por %p70, %p71
    %p73 = scmp.ne.s32.totalorder %s61, %s62
    %p74 = scmp.eq.s32.totalorder %s17, 1
    %p75 = por %p73, %p74
    %p77 = scmp.ne.s32.totalorder %s62, %s76
    %p78 = scmp.eq.s32.totalorder %s17, 0
    %p79 = por %p77, %p78
    %s81 = sadd.s32 %s80, 1
    %p84 = scmp.eq.s32.totalorder %s11, 1
    %p85 = scmp.ne.s32.totalorder %s80, %s82
    %p86 = scmp.eq.s32.totalorder %s11, 0
    %p87 = por %p85, %p86
    %p88 = scmp.ne.s32.totalorder %s80, %s82
    %p89 = scmp.eq.s32.totalorder %s16, 1
    %p90 = por %p88, %p89
    %p91 = scmp.ne.s32.totalorder %s82, %s83
    %p92 = scmp.eq.s32.totalorder %s16, 0
    %p93 = por %p91, %p92
    %p94 = scmp.ne.s32.totalorder %s82, %s83
    %p95 = scmp.eq.s32.totalorder %s17, 1
    %p96 = por %p94, %p95
    %p98 = scmp.ne.s32.totalorder %s83, %s97
    %p99 = scmp.eq.s32.totalorder %s17, 0
    %p100 = por %p98, %p99
    %s102 = sadd.s32 %s101, 1
    %p105 = scmp.eq.s32.totalorder %s11, 1
    %p106 = scmp.ne.s32.totalorder %s101, %s103
    %p107 = scmp.eq.s32.totalorder %s11, 0
    %p108 = por %p106, %p107
    %p109 = scmp.ne.s32.totalorder %s101, %s103
    %p110 = scmp.eq.s32.totalorder %s16, 1
    %p111 = por %p109, %p110
    %p112 = scmp.ne.s32.totalorder %s103, %s104
    %p113 = scmp.eq.s32.totalorder %s16, 0
    %p114 = por %p112, %p113
    %p115 = scmp.ne.s32.totalorder %s103, %s104
    %p116 = scmp.eq.s32.totalorder %s17, 1
    %p117 = por %p115, %p116
    %p119 = scmp.ne.s32.totalorder %s104, %s118
    %p120 = scmp.eq.s32.totalorder %s17, 0
    %p121 = por %p119, %p120
    %s123 = sadd.s32 %s122, 1
    %p126 = scmp.eq.s32.totalorder %s11, 1
    %p127 = scmp.ne.s32.totalorder %s122, %s124
    %p128 = scmp.eq.s32.totalorder %s11, 0
    %p129 = por %p127, %p128
    %p130 = scmp.ne.s32.totalorder %s122, %s124
    %p131 = scmp.eq.s32.totalorder %s16, 1
    %p132 = por %p130, %p131
    %p133 = scmp.ne.s32.totalorder %s124, %s125
    %p134 = scmp.eq.s32.totalorder %s16, 0
    %p135 = por %p133, %p134
    %p136 = scmp.ne.s32.totalorder %s124, %s125
    %p137 = scmp.eq.s32.totalorder %s17, 1
    %p138 = por %p136, %p137
    %p140 = scmp.ne.s32.totalorder %s125, %s139
    %p141 = scmp.eq.s32.totalorder %s17, 0
    %p142 = por %p140, %p141
    %s143 = ssub.s32 %s18, %s30
    %p144 = scmp.eq.s32.totalorder %s143, 0
    %s146 = sadd.s32 %s145, 1
    %s147 = scalar_select %p144, %s145, %s146
    %p150 = pneg %p144
    %p151 = scmp.eq.s32.totalorder %s11, 1
    %p152 = por %p150, %p151
    %p153 = scmp.ne.s32.totalorder %s145, %s148
    %p154 = scmp.eq.s32.totalorder %s11, 0
    %p155 = por %p153, %p154
    %p156 = scmp.ne.s32.totalorder %s145, %s148
    %p157 = scmp.eq.s32.totalorder %s16, 1
    %p158 = por %p156, %p157
    %p159 = scmp.ne.s32.totalorder %s148, %s149
    %p160 = scmp.eq.s32.totalorder %s16, 0
    %p161 = por %p159, %p160
    %p162 = scmp.ne.s32.totalorder %s148, %s149
    %p163 = scmp.eq.s32.totalorder %s17, 1
    %p164 = por %p162, %p163
    %p166 = scmp.ne.s32.totalorder %s149, %s165
    %p167 = scmp.eq.s32.totalorder %s17, 0
    %p168 = por %p166, %p167
    %p169 = scmp.le.s32.totalorder 1, %s11
    %p170 = scmp.lt.s32.totalorder %s11, 3
    %p171 = pnand %p169, %p170
    %p172 = pneg %p171
    // Predicated region
    $region9: #{tpu_custom_call.1} parent=5 // pred_check
      _
    $region10: #{tpu_custom_call.1} parent=5 // pred_check_branch
      %174 = sbr.rel (%p171) target = $region12
    $region11: #{tpu_custom_call.1} parent=5 // pred_region
      %s175 = ssub.s32 %s11, 1
      // Predicated region
      $region13: #{tpu_custom_call.1} parent=11 // pred_check
        %p176 = pneg %p72
      $region14: #{tpu_custom_call.1} parent=11 // pred_check_branch
        %178 = sbr.rel (%p176) target = $region16
      $region15: #{tpu_custom_call.1} parent=11 // pred_region
        _
      $region16: #{tpu_custom_call.1} parent=11 // pred_fallthru
        _
      // Predicated region
      $region17: #{tpu_custom_call.1} parent=11 // pred_check
        %p179 = pneg %p93
      $region18: #{tpu_custom_call.1} parent=11 // pred_check_branch
        %181 = sbr.rel (%p179) target = $region20
      $region19: #{tpu_custom_call.1} parent=11 // pred_region
        _
      $region20: #{tpu_custom_call.1} parent=11 // pred_fallthru
        _
      // Predicated region
      $region21: #{tpu_custom_call.1} parent=11 // pred_check
        %p182 = pneg %p114
      $region22: #{tpu_custom_call.1} parent=11 // pred_check_branch
        %184 = sbr.rel (%p182) target = $region24
      $region23: #{tpu_custom_call.1} parent=11 // pred_region
        _
      $region24: #{tpu_custom_call.1} parent=11 // pred_fallthru
        _
      // Predicated region
      $region25: #{tpu_custom_call.1} parent=11 // pred_check
        %p185 = pneg %p135
      $region26: #{tpu_custom_call.1} parent=11 // pred_check_branch
        %187 = sbr.rel (%p185) target = $region28
      $region27: #{tpu_custom_call.1} parent=11 // pred_region
        _
      $region28: #{tpu_custom_call.1} parent=11 // pred_fallthru
        _
    $region12: #{tpu_custom_call.1} parent=5 // pred_fallthru
      _
    %p188 = scmp.lt.s32.totalorder %s11, 2
    // Predicated region
    $region29: #{tpu_custom_call.1} parent=5 // pred_check
      %p189 = pneg %p188
    $region30: #{tpu_custom_call.1} parent=5 // pred_check_branch
      %191 = sbr.rel (%p189) target = $region32
    $region31: #{tpu_custom_call.1} parent=5 // pred_region
      // Predicated region
      $region33: #{tpu_custom_call.1} parent=31 // pred_check
        %p192 = pneg %p45
      $region34: #{tpu_custom_call.1} parent=31 // pred_check_branch
        %194 = sbr.rel (%p192) target = $region36
      $region35: #{tpu_custom_call.1} parent=31 // pred_region
        %p195 = scmp.lt.s32.totalorder %s18, 1
        %s196 = scalar_select %p195, %s18, 1
        %p197 = scmp.lt.s32.totalorder %s19, 0
        %s198 = scalar_select %p197, %s19, 0
        %s199 = sadd.s32 %s198, %s196
        %s200 = smul.addr %s199, 4
        %s201 = scalar_lea.vmem %s0, %s200
      $region36: #{tpu_custom_call.1} parent=31 // pred_fallthru
        _
    $region32: #{tpu_custom_call.1} parent=5 // pred_fallthru
      _
    %p202 = scmp.le.s32.totalorder 1, %s11
    %p203 = scmp.lt.s32.totalorder %s11, 3
    %p204 = pnand %p202, %p203
    %p205 = pneg %p204
    // Predicated region
    $region37: #{tpu_custom_call.1} parent=5 // pred_check
      _
    $region38: #{tpu_custom_call.1} parent=5 // pred_check_branch
      %207 = sbr.rel (%p204) target = $region40
    $region39: #{tpu_custom_call.1} parent=5 // pred_region
      %s208 = ssub.s32 %s11, 1
      %p209 = scmp.lt.s32.totalorder %s20, 1
      %s210 = scalar_select %p209, %s20, 1
      %p211 = scmp.lt.s32.totalorder %s21, 0
      %s212 = scalar_select %p211, %s21, 0
      %s213 = sadd.s32 %s212, %s210
      %s214 = smul.addr %s213, 4
      %s215 = scalar_lea.vmem %s0, %s214
      %p216 = pneg %p51
      %p217 = pneg %p48
      %p218 = pneg %p72
      %p219 = pneg %p69
      %p220 = pneg %p93
      %p221 = pneg %p90
      %p222 = pneg %p114
      %p223 = pneg %p111
      %p224 = pneg %p135
      %p225 = pneg %p132
      %p226 = pneg %p161
      %p227 = pneg %p158
      %p228 = scmp.lt.s32.totalorder %s20, 1
      %s229 = scalar_select %p228, %s20, 1
      %s230 = smul.addr %s229, 6
      %s231 = smul.addr %s230, 8
      %s232 = scalar_lea.vmem %s5, %s231
      %p233 = scmp.lt.s32.totalorder %s20, 1
      %s234 = scalar_select %p233, %s20, 1
      %p235 = scmp.lt.s32.totalorder %s21, 0
      %s236 = scalar_select %p235, %s21, 0
      %s237 = sadd.s32 %s236, %s234
      %s238 = smul.addr %s237, 4
      %s239 = scalar_lea.vmem %s0, %s238
      %p240 = scmp.lt.s32.totalorder %s20, 1
      %s241 = scalar_select %p240, %s20, 1
      %s242 = smul.addr %s241, 6
      %s243 = smul.addr %s242, 8
      %s244 = scalar_lea.vmem %s5, %s243
      %p246 = scmp.eq.s32.totalorder %s21, 0
      // Predicated region
      $region41: #{tpu_custom_call.1} parent=39 // pred_check
        %p247 = pneg %p246
      $region42: #{tpu_custom_call.1} parent=39 // pred_check_branch
        %249 = sbr.rel (%p247) target = $region44
      $region43: #{tpu_custom_call.1} parent=39 // pred_region
        %vm250 = vcmask 7168
        %251 = vst.msk [vmem:[#allocation2] sm:$0xff] %vm250, -inf
        %252 = vst.msk [vmem:[#allocation2 + $0x8] sm:$0xff] %vm250, -inf
        %253 = vst.msk [vmem:[#allocation2 + $0x10] sm:$0xff] %vm250, -inf
        %254 = vst.msk [vmem:[#allocation2 + $0x18] sm:$0xff] %vm250, -inf
        %255 = vst.msk [vmem:[#allocation2 + $0x20] sm:$0xff] %vm250, -inf
        %256 = vst.msk [vmem:[#allocation2 + $0x28] sm:$0xff] %vm250, -inf
      $region44: #{tpu_custom_call.1} parent=39 // pred_fallthru
        _
      %v257 = vld [vmem:[%s239] sm:$0xf]
      %v258 = vld [vmem:[%s1] sm:$0xf]
      %v259 = vld [vmem:[%s1 + $0x4] sm:$0xf]
      %v260 = vld [vmem:[%s1 + $0x8] sm:$0xf]
      %v261 = vld [vmem:[%s1 + $0xc] sm:$0xf]
      %v262 = vld [vmem:[%s2] sm:$0xff]
      %v263 = vld [vmem:[%s2 + $0x8] sm:$0xff]
      %v264 = vld [vmem:[%s2 + $0x10] sm:$0xff]
      %v265 = vld [vmem:[%s2 + $0x18] sm:$0xff]
      %267 = vset.pattern.permute.xlu0 0
      %268 = vperm.xlu0 %267, %v262
      %v269 = vpop.permute.xlu0 %268
      %272 = vset.pattern.permute.xlu0 0
      %273 = vperm.xlu0 %272, %v263
      %v274 = vpop.permute.xlu0 %273
      %277 = vset.pattern.permute.xlu0 0
      %278 = vperm.xlu0 %277, %v264
      %v279 = vpop.permute.xlu0 %278
      %282 = vset.pattern.permute.xlu0 0
      %283 = vperm.xlu0 %282, %v265
      %v284 = vpop.permute.xlu0 %283
      %v290 = vunpack.c.l.b16 %v258
      %v291 = vunpack.c.l.b16 %v259
      %v292 = vunpack.c.l.b16 %v260
      %v293 = vunpack.c.l.b16 %v261
      %v294 = vpack.c.b16 %v291, %v290
      %v295 = vpack.c.b16 %v293, %v292
      %vm296 = vcmask 64512
      %v298 = vsel %vm296, %v294, 0
      %v301 = vsel %vm296, %v295, 0
      %vm303 = vcmask 1043456
      %v305 = vsel %vm303, %v257, 0
      %307 = vmatprep.subr.bf16.mxu0 0
      %308 = vmatpush1.bf16.msra.mxu0 %v305
      %309 = vmatprep.subr.bf16.mxu0 0
      %310 = vmatpush1.bf16.msra.mxu0 0
      %311 = vmatprep.subr.bf16.mxu0 0
      %312 = vmatpush1.bf16.msra.mxu0 0
      %313 = vmatprep.subr.bf16.mxu0 0
      %314 = vmatpush1.bf16.msra.mxu0 0
      %315 = vmatprep.subr.bf16.mxu0 0
      %316 = vmatpush1.bf16.msra.mxu0 0
      %317 = vmatprep.subr.bf16.mxu0 0
      %318 = vmatpush1.bf16.msra.mxu0 0
      %319 = vmatprep.subr.bf16.mxu0 0
      %320 = vmatpush1.bf16.msra.mxu0 0
      %321 = vmatprep.subr.bf16.mxu0 0
      %322 = vmatpush1.bf16.msra.mxu0 0
      %323 = vmatprep.subr.bf16.mxu0 0
      %324 = vmatpush1.bf16.msra.mxu0 0
      %325 = vmatprep.subr.bf16.mxu0 0
      %326 = vmatpush1.bf16.msra.mxu0 0
      %327 = vmatprep.subr.bf16.mxu0 0
      %328 = vmatpush1.bf16.msra.mxu0 0
      %329 = vmatprep.subr.bf16.mxu0 0
      %330 = vmatpush1.bf16.msra.mxu0 0
      %331 = vmatprep.subr.bf16.mxu0 0
      %332 = vmatpush1.bf16.msra.mxu0 0
      %333 = vmatprep.subr.bf16.mxu0 0
      %334 = vmatpush1.bf16.msra.mxu0 0
      %335 = vmatprep.subr.bf16.mxu0 0
      %336 = vmatpush1.bf16.msra.mxu0 0
      %337 = vmatprep.subr.bf16.mxu0 0
      %338 = vmatpush1.bf16.msra.mxu0 0
      %339 = vmatprep.mubr.bf16.mxu0 0
      %340 = vmatmul.mubr.bf16.gmra.mrb[0].mxu0 %v298
      %v341 = vpop.f32.mrb[0].mxu0
      %v342 = vadd.f32 %v269, %v341
      %v343 = vpop.f32.mrb[0].mxu0
      %v344 = vpop.f32.mrb[0].mxu0
      %v345 = vadd.f32 %v274, %v344
      %v346 = vpop.f32.mrb[0].mxu0
      %347 = vmatprep.mubr.bf16.mxu0 0
      %348 = vmatmul.mubr.bf16.gmra.mrb[0].mxu0 %v301
      %v349 = vpop.f32.mrb[0].mxu0
      %v350 = vadd.f32 %v279, %v349
      %v351 = vpop.f32.mrb[0].mxu0
      %v352 = vpop.f32.mrb[0].mxu0
      %v353 = vadd.f32 %v284, %v352
      %v354 = vpop.f32.mrb[0].mxu0
      %355 = vdwg.mxu0
      %v356 = vmax.f32 %v342, 0.0
      %v357 = vmax.f32 %v345, 0.0
      %v358 = vmax.f32 %v350, 0.0
      %v359 = vmax.f32 %v353, 0.0
      %vm360 = vcmask 130048
      %v361 = vsel %vm360, %v356, -inf
      %362 = vmax.xlane.f32.xlu0 %v361
      %v363 = vpop.xlane.xlu0 %362
      %v364 = vsel %vm360, %v357, -inf
      %365 = vmax.xlane.f32.xlu0 %v364
      %v366 = vpop.xlane.xlu0 %365
      %v367 = vld [vmem:[%s3] sm:$0xf]
      %v368 = vld [vmem:[%s3 + $0x4] sm:$0xf]
      %v369 = vld [vmem:[%s3 + $0x8] sm:$0xf]
      %v370 = vld [vmem:[%s3 + $0xc] sm:$0xf]
      %v371 = vld [vmem:[%s4] sm:$0xff]
      %v372 = vld [vmem:[%s4 + $0x8] sm:$0xff]
      %v373 = vld [vmem:[%s4 + $0x10] sm:$0xff]
      %v374 = vld [vmem:[%s4 + $0x18] sm:$0xff]
      %v375 = vpack.c.bf16 %v359, %v358
      %377 = vset.pattern.permute.xlu0 0
      %378 = vperm.xlu0 %377, %v371
      %v379 = vpop.permute.xlu0 %378
      %382 = vset.pattern.permute.xlu0 0
      %383 = vperm.xlu0 %382, %v372
      %v384 = vpop.permute.xlu0 %383
      %387 = vset.pattern.permute.xlu0 0
      %388 = vperm.xlu0 %387, %v373
      %v389 = vpop.permute.xlu0 %388
      %392 = vset.pattern.permute.xlu0 0
      %393 = vperm.xlu0 %392, %v374
      %v394 = vpop.permute.xlu0 %393
      %v400 = vunpack.c.l.b16 %v367
      %v401 = vunpack.c.l.b16 %v368
      %v402 = vunpack.c.l.b16 %v369
      %v403 = vunpack.c.l.b16 %v370
      %v404 = vpack.c.b16 %v401, %v400
      %v405 = vpack.c.b16 %v403, %v402
      %v407 = vsel %vm360, %v404, 0
      %v410 = vsel %vm360, %v405, 0
      %412 = vmatprep.subr.bf16.mxu0 0
      %413 = vmatpush1.bf16.msra.mxu0 %v375
      %414 = vmatprep.subr.bf16.mxu0 0
      %415 = vmatpush1.bf16.msra.mxu0 0
      %416 = vmatprep.subr.bf16.mxu0 0
      %417 = vmatpush1.bf16.msra.mxu0 0
      %418 = vmatprep.subr.bf16.mxu0 0
      %419 = vmatpush1.bf16.msra.mxu0 0
      %420 = vmatprep.subr.bf16.mxu0 0
      %421 = vmatpush1.bf16.msra.mxu0 0
      %422 = vmatprep.subr.bf16.mxu0 0
      %423 = vmatpush1.bf16.msra.mxu0 0
      %424 = vmatprep.subr.bf16.mxu0 0
      %425 = vmatpush1.bf16.msra.mxu0 0
      %426 = vmatprep.subr.bf16.mxu0 0
      %427 = vmatpush1.bf16.msra.mxu0 0
      %428 = vmatprep.subr.bf16.mxu0 0
      %429 = vmatpush1.bf16.msra.mxu0 0
      %430 = vmatprep.subr.bf16.mxu0 0
      %431 = vmatpush1.bf16.msra.mxu0 0
      %432 = vmatprep.subr.bf16.mxu0 0
      %433 = vmatpush1.bf16.msra.mxu0 0
      %434 = vmatprep.subr.bf16.mxu0 0
      %435 = vmatpush1.bf16.msra.mxu0 0
      %436 = vmatprep.subr.bf16.mxu0 0
      %437 = vmatpush1.bf16.msra.mxu0 0
      %438 = vmatprep.subr.bf16.mxu0 0
      %439 = vmatpush1.bf16.msra.mxu0 0
      %440 = vmatprep.subr.bf16.mxu0 0
      %441 = vmatpush1.bf16.msra.mxu0 0
      %442 = vmatprep.subr.bf16.mxu0 0
      %443 = vmatpush1.bf16.msra.mxu0 0
      %444 = vmatprep.mubr.bf16.mxu0 0
      %445 = vmatmul.mubr.bf16.gmra.mrb[0].mxu0 %v407
      %v446 = vpop.f32.mrb[0].mxu0
      %v447 = vadd.f32 %v379, %v446
      %v448 = vpop.f32.mrb[0].mxu0
      %v449 = vpop.f32.mrb[0].mxu0
      %v450 = vadd.f32 %v384, %v449
      %v451 = vpop.f32.mrb[0].mxu0
      %452 = vmatprep.mubr.bf16.mxu0 0
      %453 = vmatmul.mubr.bf16.gmra.mrb[0].mxu0 %v410
      %v454 = vpop.f32.mrb[0].mxu0
      %v455 = vadd.f32 %v389, %v454
      %v456 = vpop.f32.mrb[0].mxu0
      %v457 = vpop.f32.mrb[0].mxu0
      %v458 = vadd.f32 %v394, %v457
      %v459 = vpop.f32.mrb[0].mxu0
      %460 = vdwg.mxu0
      %v461 = vmax.f32 %v447, 0.0
      %v462 = vmax.f32 %v450, 0.0
      %v463 = vmax.f32 %v455, 0.0
      %v464 = vmax.f32 %v458, 0.0
      %v465 = vsel %vm360, %v461, -inf
      %466 = vmax.xlane.f32.xlu0 %v465
      %v467 = vpop.xlane.xlu0 %466
      %v468 = vsel %vm360, %v462, -inf
      %469 = vmax.xlane.f32.xlu0 %v468
      %v470 = vpop.xlane.xlu0 %469
      %v471 = vsel %vm360, %v463, -inf
      %472 = vmax.xlane.f32.xlu0 %v471
      %v473 = vpop.xlane.xlu0 %472
      %v474 = vsel %vm360, %v464, -inf
      %475 = vmax.xlane.f32.xlu0 %v474
      %v476 = vpop.xlane.xlu0 %475
      %v477 = vld [vmem:[#allocation2] sm:$0xff]
      %v478 = vld [vmem:[#allocation2 + $0x8] sm:$0xff]
      %v479 = vld [vmem:[#allocation2 + $0x10] sm:$0xff]
      %v480 = vld [vmem:[#allocation2 + $0x18] sm:$0xff]
      %v481 = vld [vmem:[#allocation2 + $0x20] sm:$0xff]
      %v482 = vld [vmem:[#allocation2 + $0x28] sm:$0xff]
      %v483 = vmax.f32 %v477, %v363
      %v484 = vmax.f32 %v478, %v366
      %v485 = vmax.f32 %v479, %v467
      %v486 = vmax.f32 %v480, %v470
      %v487 = vmax.f32 %v481, %v473
      %v488 = vmax.f32 %v482, %v476
      %vm489 = vcmask 7168
      %490 = vst.msk [vmem:[#allocation2] sm:$0xff] %vm489, %v483
      %491 = vst.msk [vmem:[#allocation2 + $0x8] sm:$0xff] %vm489, %v484
      %492 = vst.msk [vmem:[#allocation2 + $0x10] sm:$0xff] %vm489, %v485
      %493 = vst.msk [vmem:[#allocation2 + $0x18] sm:$0xff] %vm489, %v486
      %494 = vst.msk [vmem:[#allocation2 + $0x20] sm:$0xff] %vm489, %v487
      %495 = vst.msk [vmem:[#allocation2 + $0x28] sm:$0xff] %vm489, %v488
      // Predicated region
      $region45: #{tpu_custom_call.1} parent=39 // pred_check
        %p496 = pneg %p246
      $region46: #{tpu_custom_call.1} parent=39 // pred_check_branch
        %498 = sbr.rel (%p496) target = $region48
      $region47: #{tpu_custom_call.1} parent=39 // pred_region
        %v499 = vld [vmem:[#allocation2] sm:$0xff]
        %v500 = vld [vmem:[#allocation2 + $0x8] sm:$0xff]
        %v501 = vld [vmem:[#allocation2 + $0x10] sm:$0xff]
        %v502 = vld [vmem:[#allocation2 + $0x18] sm:$0xff]
        %v503 = vld [vmem:[#allocation2 + $0x20] sm:$0xff]
        %v504 = vld [vmem:[#allocation2 + $0x28] sm:$0xff]
        %505 = vst.msk [vmem:[%s244] sm:$0xff] %vm489, %v499
        %506 = vst.msk [vmem:[%s244 + $0x8] sm:$0xff] %vm489, %v500
        %507 = vst.msk [vmem:[%s244 + $0x10] sm:$0xff] %vm489, %v501
        %508 = vst.msk [vmem:[%s244 + $0x18] sm:$0xff] %vm489, %v502
        %509 = vst.msk [vmem:[%s244 + $0x20] sm:$0xff] %vm489, %v503
        %510 = vst.msk [vmem:[%s244 + $0x28] sm:$0xff] %vm489, %v504
      $region48: #{tpu_custom_call.1} parent=39 // pred_fallthru
        _
      %p511 = scmp.lt.s32.totalorder %s20, 1
      %s512 = scalar_select %p511, %s20, 1
      %s513 = smul.addr %s512, 6
      %s514 = smul.addr %s513, 8
      %s515 = scalar_lea.vmem %s5, %s514
      // Predicated region
      $region49: #{tpu_custom_call.1} parent=39 // pred_check
        %p516 = pneg %p158
      $region50: #{tpu_custom_call.1} parent=39 // pred_check_branch
        %518 = sbr.rel (%p516) target = $region52
      $region51: #{tpu_custom_call.1} parent=39 // pred_region
        _
      $region52: #{tpu_custom_call.1} parent=39 // pred_fallthru
        _
    $region40: #{tpu_custom_call.1} parent=5 // pred_fallthru
      _
    %p519 = scmp.le.s32.totalorder 2, %s11
    // Predicated region
    $region53: #{tpu_custom_call.1} parent=5 // pred_check
      %p520 = pneg %p519
    $region54: #{tpu_custom_call.1} parent=5 // pred_check_branch
      %522 = sbr.rel (%p520) target = $region56
    $region55: #{tpu_custom_call.1} parent=5 // pred_region
      %s523 = ssub.s32 %s11, 2
      // Predicated region
      $region57: #{tpu_custom_call.1} parent=55 // pred_check
        %p524 = pneg %p164
      $region58: #{tpu_custom_call.1} parent=55 // pred_check_branch
        %526 = sbr.rel (%p524) target = $region60
      $region59: #{tpu_custom_call.1} parent=55 // pred_region
        %p527 = scmp.lt.s32.totalorder %s22, 1
        %s528 = scalar_select %p527, %s22, 1
        %s529 = smul.addr %s528, 6
        %s530 = smul.addr %s529, 8
        %s531 = scalar_lea.vmem %s5, %s530
      $region60: #{tpu_custom_call.1} parent=55 // pred_fallthru
        _
    $region56: #{tpu_custom_call.1} parent=5 // pred_fallthru
      _
  $region6: #{tpu_custom_call.1} parent=0 // loop_footer
    %s15 = sadd.s32 1, %s11
  $region7: #{tpu_custom_call.1} parent=0 // loop_footer_branch
    %10 = sbr.rel target = $region3
  $region8: #{tpu_custom_call.1} parent=0 // loop_exit
    _

</llo_original>
